<compile_context>
chip_gen: v6e
topology: v6e:2x2x1
jax: 0.10.0
libtpu: 0.0.40
codegen_flags: <defaults>
</compile_context>

<pallas_src>
import functools

import jax
import jax.numpy as jnp
from jax.experimental import pallas as pl
from jax.experimental.pallas import tpu as pltpu


# ---------------------------------------------------------------------------
# helpers
# ---------------------------------------------------------------------------
def _pick_hw_tile(hw: int, max_tile: int = 2048) -> int:
    """Largest lane-dense (multiple-of-128) tile <= max_tile dividing hw.

    Falls back to the full extent when hw is not a multiple of 128
    (full-extent blocks always satisfy the (8, 128) BlockSpec rule).
    """
    if hw % 128 != 0:
        # TODO(synk): pad H*W up to a multiple of 128 for small feature maps
        # (e.g. 7x7) so stores stay unmasked; full-extent block is correct
        # but uses masked partial stores.
        return hw
    t = min(hw, max_tile)
    while hw % t != 0:
        t -= 128
    return t


# ---------------------------------------------------------------------------
# kernels
# ---------------------------------------------------------------------------
def _copy_kernel(x_ref, o_ref):
    # Pure data movement: all the "work" lives in the BlockSpec-generated DMAs.
    o_ref[...] = x_ref[...]


def _conv1x1_bn_relu_kernel(w_ref, scale_ref, shift_ref, x_ref, o_ref):
    # w:     (Cout, Cin)   1x1 conv weight (resident across grid steps)
    # scale: (Cout, 1)     BN gamma / sqrt(var + eps)
    # shift: (Cout, 1)     BN beta - mean * scale
    # x:     (1, Cin, T)   input tile (channels on sublanes, HW on lanes)
    # o:     (1, Cout, T)  output tile
    acc = jnp.dot(w_ref[...], x_ref[0], preferred_element_type=jnp.float32)
    acc = acc * scale_ref[...] + shift_ref[...]
    o_ref[0] = jnp.maximum(acc, 0.0).astype(o_ref.dtype)


# ---------------------------------------------------------------------------
# wrappers
# ---------------------------------------------------------------------------
@jax.jit
def identity_copy(x):
    """Pass-through branch of Identity as a tiled, lane-dense Pallas copy."""
    N, C, H, W = x.shape
    hw = H * W
    T = _pick_hw_tile(hw)
    x2 = x.reshape(N, C, hw)
    out = pl.pallas_call(
        _copy_kernel,
        out_shape=jax.ShapeDtypeStruct((N, C, hw), x.dtype),
        grid=(N, hw // T),
        in_specs=[pl.BlockSpec((1, C, T), lambda n, t: (n, 0, t))],
        out_specs=pl.BlockSpec((1, C, T), lambda n, t: (n, 0, t)),
        compiler_params=pltpu.CompilerParams(
            dimension_semantics=("parallel", "parallel")),
    )(x2)
    return out.reshape(N, C, H, W)


@functools.partial(jax.jit, static_argnames=("stride",))
def conv1x1_bn_relu(x, w, gamma, beta, mean, var, eps, *, stride):
    """Projection branch: fused 1x1 conv (stride) + eval-mode BN + ReLU."""
    # TODO(synk): training-mode BatchNorm (batch statistics / running-stat
    # update) is not implemented; eval-mode folded scale/shift only.
    N, Cin, H, W = x.shape
    Cout = w.shape[0]
    if stride > 1:
        x = x[:, :, ::stride, ::stride]        # 1x1 kernel, padding 0
    Ho, Wo = x.shape[2], x.shape[3]
    hw = Ho * Wo
    T = _pick_hw_tile(hw)
    x2 = x.reshape(N, Cin, hw)

    inv = gamma / jnp.sqrt(var + eps)
    scale = inv.reshape(Cout, 1)
    shift = (beta - mean * inv).reshape(Cout, 1)

    out = pl.pallas_call(
        _conv1x1_bn_relu_kernel,
        out_shape=jax.ShapeDtypeStruct((N, Cout, hw), x.dtype),
        grid=(N, hw // T),
        in_specs=[
            pl.BlockSpec((Cout, Cin), lambda n, t: (0, 0)),   # weight
            pl.BlockSpec((Cout, 1), lambda n, t: (0, 0)),     # BN scale
            pl.BlockSpec((Cout, 1), lambda n, t: (0, 0)),     # BN shift
            pl.BlockSpec((1, Cin, T), lambda n, t: (n, 0, t)),
        ],
        out_specs=pl.BlockSpec((1, Cout, T), lambda n, t: (n, 0, t)),
        compiler_params=pltpu.CompilerParams(
            dimension_semantics=("parallel", "parallel")),
    )(w, scale, shift, x2)
    return out.reshape(N, Cout, Ho, Wo)


class Identity:
    """JAX/Pallas equivalent of the PyTorch `Identity` module."""

    def __init__(self, input_size, in_channels, out_channels, stride, *, key=None):
        self.stride = int(stride)
        self.is_passthrough = (in_channels == out_channels and stride == 1)
        if not self.is_passthrough:
            if key is None:
                key = jax.random.PRNGKey(0)
            # ConvBNReLU(kernel_size=1): kaiming_normal_(mode='fan_out') conv
            # init; BatchNorm default params (gamma=1, beta=0, stats 0/1).
            fan_out = out_channels                       # 1x1 kernel
            std = (2.0 / fan_out) ** 0.5
            self.weight = std * jax.random.normal(
                key, (out_channels, in_channels), dtype=jnp.float32)
            self.gamma = jnp.ones((out_channels,), jnp.float32)
            self.beta = jnp.zeros((out_channels,), jnp.float32)
            self.running_mean = jnp.zeros((out_channels,), jnp.float32)
            self.running_var = jnp.ones((out_channels,), jnp.float32)
            self.eps = 1e-5

    def __call__(self, x):
        if self.is_passthrough:
            return identity_copy(x)
        return conv1x1_bn_relu(x, self.weight, self.gamma, self.beta,
                               self.running_mean, self.running_var, self.eps,
                               stride=self.stride)


# ---------------------------------------------------------------------------
# ChannelShuffle (previous round's op), permutation pushed into BlockSpecs
# ---------------------------------------------------------------------------
@functools.partial(jax.jit, static_argnames=("groups",))
def channel_shuffle(x, groups: int = 1):
    """out[n, i*groups + j] = x[n, j*cpg + i].

    Grid axis j walks contiguous cpg-channel slabs of the input and drops them
    side by side along the lane axis of an (N, cpg, groups*hw) buffer; the
    final reshape realises channel index i*groups + j for free (no transpose,
    no in-kernel shuffle — kernel body is a straight copy).
    """
    if groups == 1:
        return x
    N, C, H, W = x.shape
    assert C % groups == 0, "channels must be divisible by groups"
    cpg = C // groups
    hw = H * W
    # (8, 128) BlockSpec constraints for f32 sub-blocks:
    assert cpg % 8 == 0, "cpg must be a multiple of 8"      # TODO(synk): pad C
    assert hw % 128 == 0, "H*W must be a multiple of 128"   # TODO(synk): pad HW
    T = _pick_hw_tile(hw)
    nt = hw // T
    x2 = x.reshape(N, C, hw)
    out = pl.pallas_call(
        _copy_kernel,
        out_shape=jax.ShapeDtypeStruct((N, cpg, groups * hw), x.dtype),
        grid=(N, groups, nt),
        in_specs=[pl.BlockSpec((1, cpg, T), lambda n, j, t: (n, j, t))],
        out_specs=pl.BlockSpec((1, cpg, T),
                               lambda n, j, t, nt=nt: (n, 0, j * nt + t)),
        compiler_params=pltpu.CompilerParams(
            dimension_semantics=("parallel", "parallel", "parallel")),
    )(x2)
    return out.reshape(N, C, H, W)


# ---------------------------------------------------------------------------
# pure-JAX references
# ---------------------------------------------------------------------------
def _conv1x1_bn_relu_ref(x, w, gamma, beta, mean, var, eps, stride):
    xs = x[:, :, ::stride, ::stride]
    y = jnp.einsum("oc,nchw->nohw", w, xs)
    inv = gamma / jnp.sqrt(var + eps)
    y = y * inv[None, :, None, None] + (beta - mean * inv)[None, :, None, None]
    return jnp.maximum(y, 0.0)


def _channel_shuffle_ref(x, groups):
    N, C, H, W = x.shape
    cpg = C // groups
    return jnp.transpose(x.reshape(N, groups, cpg, H, W),
                         (0, 2, 1, 3, 4)).reshape(N, C, H, W)


# ---------------------------------------------------------------------------
if __name__ == "__main__":
    key = jax.random.PRNGKey(0)
    kx, kw, ks = jax.random.split(key, 3)

    # ---- Identity, pass-through branch: in == out, stride == 1 ------------
    x = jax.random.normal(kx, (2, 4, 16, 16), dtype=jnp.float32)
    op = Identity(input_size=16, in_channels=4, out_channels=4, stride=1)
    y = jax.block_until_ready(op(x))
    assert y.shape == x.shape and y.dtype == x.dtype
    assert jnp.allclose(y, x), "identity branch mismatch"

    # ---- Identity, projection branch: 1x1 conv (stride 2) + BN + ReLU -----
    proj = Identity(input_size=16, in_channels=4, out_channels=8, stride=2,
                    key=kw)
    y2 = jax.block_until_ready(proj(x))
    y2_ref = _conv1x1_bn_relu_ref(x, proj.weight, proj.gamma, proj.beta,
                                  proj.running_mean, proj.running_var,
                                  proj.eps, 2)
    assert y2.shape == (2, 8, 8, 8) and y2.dtype == x.dtype
    assert jnp.allclose(y2, y2_ref, atol=1e-5, rtol=1e-5), "projection mismatch"

    # ---- ChannelShuffle (review target), now a DMA-level permutation ------
    xs = jax.random.normal(ks, (2, 16, 16, 16), dtype=jnp.float32)
    ys = jax.block_until_ready(channel_shuffle(xs, groups=2))
    assert jnp.allclose(ys, _channel_shuffle_ref(xs, 2)), "channel shuffle mismatch"

    print("KERNEL_OK")
</pallas_src>

<mosaic_0001>
module attributes {stable_mosaic.version = 11 : i64} {
  func.func @_copy_kernel(%arg0: i32, %arg1: i32, %arg2: memref<1x4x256xf32, #tpu.memory_space<vmem>>, %arg3: memref<1x4x256xf32, #tpu.memory_space<vmem>>) attributes {dimension_semantics = [#tpu.dimension_semantics<parallel>, #tpu.dimension_semantics<parallel>], iteration_bounds = array<i64: 2, 1>, scalar_prefetch = 0 : i64, scratch_operands = 0 : i64, tpu.core_type = #tpu.core_type<tc>, window_params = [{transform_indices = @transform_0, window_bounds = array<i64: 1, 4, 256>}, {transform_indices = @transform_1, window_bounds = array<i64: 1, 4, 256>}]} {
    %c0 = arith.constant 0 : index
    %c0_0 = arith.constant 0 : index
    %c0_1 = arith.constant 0 : index
    %0 = vector.load %arg2[%c0, %c0_0, %c0_1] : memref<1x4x256xf32, #tpu.memory_space<vmem>>, vector<1x4x256xf32>
    %c0_2 = arith.constant 0 : index
    %c0_3 = arith.constant 0 : index
    %c0_4 = arith.constant 0 : index
    %1 = vector.load %arg3[%c0_2, %c0_3, %c0_4] : memref<1x4x256xf32, #tpu.memory_space<vmem>>, vector<1x4x256xf32>
    tpu.vector_store %arg3[%c0_2, %c0_3, %c0_4], %0 {strides = array<i32>} : memref<1x4x256xf32, #tpu.memory_space<vmem>>, vector<1x4x256xf32>,
    return
  }
  func.func @transform_0(%arg0: i32, %arg1: i32) -> (i32, i32, i32) {
    %c0_i32 = arith.constant 0 : i32
    %c0_i32_0 = arith.constant 0 : i32
    return %arg0, %c0_i32, %arg1 : i32, i32, i32
  }
  func.func @transform_1(%arg0: i32, %arg1: i32) -> (i32, i32, i32) {
    %c0_i32 = arith.constant 0 : i32
    %c0_i32_0 = arith.constant 0 : i32
    return %arg0, %c0_i32, %arg1 : i32, i32, i32
  }
}

</mosaic_0001>

<llo_original>
// kernel: identity_copy.1
$region0: #{identity_copy.1}
  #allocation0 [shape = 'u32[]', space=smem, size = 0x4, offset = 0x4, fixed_abs, tag = 'smem constant byte address 0x4 - core index']
  #allocation1 [shape = 'u32[144,128]{1,0:T(1,128)}', space=vmem, size = 0x12000, scoped, tag = 'internal scratch']
  %s0 = inlined_call_operand.vmem [shape: f32[2,4,256], index: 0, kind: input, shape index: {}]
  %s1 = inlined_call_operand.vmem [shape: f32[2,4,256], index: 1, kind: output, shape index: {}]
  %s2 = sld [smem:[#allocation0]]
  $region37: #{identity_copy.1} parent=0
    _
  %s4 = ssub.s32 1, %s2
  %s5 = scalar_select 0, %s4, %s2
  loop: start=0, step=1, limit=4
  $region2: #{identity_copy.1} parent=0 // loop_pre_header
    _
  $region3: #{identity_copy.1} parent=0 // loop_header
    %s7 = sphi 0, %s11
    %p8 = scmp.ge.s32.totalorder %s7, 4
    %s14 = sphi 0, %s26
    %s15 = sphi 0, %s22
    %s16 = sphi 0, %s14
    %s17 = sphi 0, %s15
    %s18 = sphi 0, %s16
    %s19 = sphi 0, %s17
    %s31 = sphi 0, %s33
    %s34 = sphi 0, %s31
    %s35 = sphi 0, %s34
    %s51 = sphi 0, %s35
    %s59 = sphi 0, %s61
    %s62 = sphi 0, %s59
    %s63 = sphi 0, %s62
    %s79 = sphi 0, %s63
  $region4: #{identity_copy.1} parent=0 // loop_header_branch
    %10 = sbr.rel (%p8) target = $region8
  $region5: #{identity_copy.1} parent=0 // loop_body
    %s12 = ssub.s32 %s7, 1
    %s13 = ssub.s32 %s7, 2
    %s20 = sadd.s32 1, %s15
    %p21 = scmp.ge.s32.totalorder %s20, 1
    %s22 = scalar_select %p21, 0, %s20
    %s23 = sadd.s32 1, %s14
    %s24 = scalar_select %p21, %s23, %s14
    %p25 = scmp.ge.s32.totalorder %s24, 2
    %s26 = scalar_select %p25, 0, %s24
    %s27 = ssub.s32 %s14, %s26
    %s28 = ssub.s32 %s15, %s22
    %s29 = sor.u32 %s27, %s28
    %p30 = scmp.eq.s32.totalorder %s29, 0
    %s32 = sadd.s32 %s31, 1
    %s33 = scalar_select %p30, %s31, %s32
    %p36 = pneg %p30
    %p37 = scmp.eq.s32.totalorder %s7, 1
    %p38 = por %p36, %p37
    %p39 = scmp.ne.s32.totalorder %s31, %s34
    %p40 = scmp.eq.s32.totalorder %s7, 0
    %p41 = por %p39, %p40
    %p42 = scmp.ne.s32.totalorder %s31, %s34
    %p43 = scmp.eq.s32.totalorder %s12, 1
    %p44 = por %p42, %p43
    %p45 = scmp.ne.s32.totalorder %s34, %s35
    %p46 = scmp.eq.s32.totalorder %s12, 0
    %p47 = por %p45, %p46
    %p48 = scmp.ne.s32.totalorder %s34, %s35
    %p49 = scmp.eq.s32.totalorder %s13, 1
    %p50 = por %p48, %p49
    %p52 = scmp.ne.s32.totalorder %s35, %s51
    %p53 = scmp.eq.s32.totalorder %s13, 0
    %p54 = por %p52, %p53
    %s55 = ssub.s32 %s14, %s26
    %s56 = ssub.s32 %s15, %s22
    %s57 = sor.u32 %s55, %s56
    %p58 = scmp.eq.s32.totalorder %s57, 0
    %s60 = sadd.s32 %s59, 1
    %s61 = scalar_select %p58, %s59, %s60
    %p64 = pneg %p58
    %p65 = scmp.eq.s32.totalorder %s7, 1
    %p66 = por %p64, %p65
    %p67 = scmp.ne.s32.totalorder %s59, %s62
    %p68 = scmp.eq.s32.totalorder %s7, 0
    %p69 = por %p67, %p68
    %p70 = scmp.ne.s32.totalorder %s59, %s62
    %p71 = scmp.eq.s32.totalorder %s12, 1
    %p72 = por %p70, %p71
    %p73 = scmp.ne.s32.totalorder %s62, %s63
    %p74 = scmp.eq.s32.totalorder %s12, 0
    %p75 = por %p73, %p74
    %p76 = scmp.ne.s32.totalorder %s62, %s63
    %p77 = scmp.eq.s32.totalorder %s13, 1
    %p78 = por %p76, %p77
    %p80 = scmp.ne.s32.totalorder %s63, %s79
    %p81 = scmp.eq.s32.totalorder %s13, 0
    %p82 = por %p80, %p81
    %p83 = scmp.le.s32.totalorder 1, %s7
    %p84 = scmp.lt.s32.totalorder %s7, 3
    %p85 = pnand %p83, %p84
    %p86 = pneg %p85
    // Predicated region
    $region9: #{identity_copy.1} parent=5 // pred_check
      _
    $region10: #{identity_copy.1} parent=5 // pred_check_branch
      %88 = sbr.rel (%p85) target = $region12
    $region11: #{identity_copy.1} parent=5 // pred_region
      %s89 = ssub.s32 %s7, 1
    $region12: #{identity_copy.1} parent=5 // pred_fallthru
      _
    %p90 = scmp.lt.s32.totalorder %s7, 2
    // Predicated region
    $region13: #{identity_copy.1} parent=5 // pred_check
      %p91 = pneg %p90
    $region14: #{identity_copy.1} parent=5 // pred_check_branch
      %93 = sbr.rel (%p91) target = $region16
    $region15: #{identity_copy.1} parent=5 // pred_region
      // Predicated region
      $region17: #{identity_copy.1} parent=15 // pred_check
        %p94 = pneg %p41
      $region18: #{identity_copy.1} parent=15 // pred_check_branch
        %96 = sbr.rel (%p94) target = $region20
      $region19: #{identity_copy.1} parent=15 // pred_region
        %s97 = smul.u32 2, %s15
        %p98 = scmp.lt.s32.totalorder %s14, 1
        %s99 = scalar_select %p98, %s14, 1
        %p100 = scmp.lt.s32.totalorder %s97, 1
        %s101 = scalar_select %p100, %s97, 1
        %s102 = smul.addr %s99, 2
        %s103 = sadd.s32 %s101, %s102
        %s104 = smul.addr %s103, 4
        %s105 = scalar_lea.vmem %s0, %s104
        %s106 = smul.u32 2, %s15
      $region20: #{identity_copy.1} parent=15 // pred_fallthru
        _
    $region16: #{identity_copy.1} parent=5 // pred_fallthru
      _
    %p107 = scmp.le.s32.totalorder 1, %s7
    %p108 = scmp.lt.s32.totalorder %s7, 3
    %p109 = pnand %p107, %p108
    %p110 = pneg %p109
    // Predicated region
    $region21: #{identity_copy.1} parent=5 // pred_check
      _
    $region22: #{identity_copy.1} parent=5 // pred_check_branch
      %112 = sbr.rel (%p109) target = $region24
    $region23: #{identity_copy.1} parent=5 // pred_region
      %s113 = ssub.s32 %s7, 1
      %s114 = smul.u32 2, %s17
      %p115 = scmp.lt.s32.totalorder %s16, 1
      %s116 = scalar_select %p115, %s16, 1
      %p117 = scmp.lt.s32.totalorder %s114, 1
      %s118 = scalar_select %p117, %s114, 1
      %s119 = smul.addr %s116, 2
      %s120 = sadd.s32 %s118, %s119
      %s121 = smul.addr %s120, 4
      %s122 = scalar_lea.vmem %s0, %s121
      %p123 = pneg %p47
      %p124 = pneg %p44
      %p125 = pneg %p75
      %p126 = pneg %p72
      %s127 = smul.u32 2, %s17
      %p128 = scmp.lt.s32.totalorder %s16, 1
      %s129 = scalar_select %p128, %s16, 1
      %p130 = scmp.lt.s32.totalorder %s127, 1
      %s131 = scalar_select %p130, %s127, 1
      %s132 = smul.addr %s129, 2
      %s133 = sadd.s32 %s131, %s132
      %s134 = smul.addr %s133, 4
      %s135 = scalar_lea.vmem %s1, %s134
      %s136 = smul.u32 2, %s17
      %p137 = scmp.lt.s32.totalorder %s16, 1
      %s138 = scalar_select %p137, %s16, 1
      %p139 = scmp.lt.s32.totalorder %s136, 1
      %s140 = scalar_select %p139, %s136, 1
      %s141 = smul.addr %s138, 2
      %s142 = sadd.s32 %s140, %s141
      %s143 = smul.addr %s142, 4
      %s144 = scalar_lea.vmem %s0, %s143
      %s145 = smul.u32 2, %s17
      %s146 = smul.u32 2, %s17
      %p147 = scmp.lt.s32.totalorder %s16, 1
      %s148 = scalar_select %p147, %s16, 1
      %p149 = scmp.lt.s32.totalorder %s146, 1
      %s150 = scalar_select %p149, %s146, 1
      %s151 = smul.addr %s148, 2
      %s152 = sadd.s32 %s150, %s151
      %s153 = smul.addr %s152, 4
      %s154 = scalar_lea.vmem %s1, %s153
      %s155 = smul.u32 2, %s17
      %v156 = vld [vmem:[%s144] sm:$0xff]
      %157 = vst [vmem:[%s154] sm:$0xff] %v156
      %s158 = smul.u32 2, %s17
      %p159 = scmp.lt.s32.totalorder %s16, 1
      %s160 = scalar_select %p159, %s16, 1
      %p161 = scmp.lt.s32.totalorder %s158, 1
      %s162 = scalar_select %p161, %s158, 1
      %s163 = smul.addr %s160, 2
      %s164 = sadd.s32 %s162, %s163
      %s165 = smul.addr %s164, 4
      %s166 = scalar_lea.vmem %s1, %s165
      // Predicated region
      $region25: #{identity_copy.1} parent=23 // pred_check
        %p167 = pneg %p72
      $region26: #{identity_copy.1} parent=23 // pred_check_branch
        %169 = sbr.rel (%p167) target = $region28
      $region27: #{identity_copy.1} parent=23 // pred_region
        %s170 = smul.u32 2, %s17
      $region28: #{identity_copy.1} parent=23 // pred_fallthru
        _
    $region24: #{identity_copy.1} parent=5 // pred_fallthru
      _
    %p171 = scmp.le.s32.totalorder 2, %s7
    // Predicated region
    $region29: #{identity_copy.1} parent=5 // pred_check
      %p172 = pneg %p171
    $region30: #{identity_copy.1} parent=5 // pred_check_branch
      %174 = sbr.rel (%p172) target = $region32
    $region31: #{identity_copy.1} parent=5 // pred_region
      %s175 = ssub.s32 %s7, 2
      // Predicated region
      $region33: #{identity_copy.1} parent=31 // pred_check
        %p176 = pneg %p78
      $region34: #{identity_copy.1} parent=31 // pred_check_branch
        %178 = sbr.rel (%p176) target = $region36
      $region35: #{identity_copy.1} parent=31 // pred_region
        %s179 = smul.u32 2, %s19
        %p180 = scmp.lt.s32.totalorder %s18, 1
        %s181 = scalar_select %p180, %s18, 1
        %p182 = scmp.lt.s32.totalorder %s179, 1
        %s183 = scalar_select %p182, %s179, 1
        %s184 = smul.addr %s181, 2
        %s185 = sadd.s32 %s183, %s184
        %s186 = smul.addr %s185, 4
        %s187 = scalar_lea.vmem %s1, %s186
      $region36: #{identity_copy.1} parent=31 // pred_fallthru
        _
    $region32: #{identity_copy.1} parent=5 // pred_fallthru
      _
  $region6: #{identity_copy.1} parent=0 // loop_footer
    %s11 = sadd.s32 1, %s7
  $region7: #{identity_copy.1} parent=0 // loop_footer_branch
    %6 = sbr.rel target = $region3
  $region8: #{identity_copy.1} parent=0 // loop_exit
    _

</llo_original>
